<compile_context>
chip_gen: v5e
topology: v5e:2x2
jax: 0.10.0
libtpu: 0.0.40
codegen_flags: <defaults>
</compile_context>

<pallas_src>
import math
import functools

import jax
import jax.numpy as jnp
from jax.experimental import pallas as pl
from jax.experimental.pallas import tpu as pltpu

_LANE = 128
_SUBLANE = 16   # multiple of 8 (f32) and 16 (bf16) sublane packing


def _round_up(x, mult):
    return ((x + mult - 1) // mult) * mult


def _gamma_loss_kernel(yp_ref, yt_ref, out_ref, *, kappa, const_term, tm, lane,
                       grid_n, last_valid_rows):
    """One (tm, lane) tile -> (1, 1, lane) partial sum in its own output block."""

    def partial_sum(yp, yt):
        # lgamma(k) - k*log(k) + k*(yp + yt*exp(-yp)) - (k-1)*log(yt)
        elem = const_term + kappa * (yp + yt * jnp.exp(-yp))
        if kappa != 1.0:
            elem = elem - (kappa - 1.0) * jnp.log(yt)
        # Sublane-only reduce: output stays lane-dense, no cross-step carry.
        return jnp.sum(elem, axis=0, keepdims=True)[None]

    if last_valid_rows == tm:
        # Every block is full -> completely mask-free hot path.
        out_ref[...] = partial_sum(yp_ref[...].astype(jnp.float32),
                                   yt_ref[...].astype(jnp.float32))
    else:
        i = pl.program_id(0)

        @pl.when(i < grid_n - 1)
        def _():
            out_ref[...] = partial_sum(yp_ref[...].astype(jnp.float32),
                                       yt_ref[...].astype(jnp.float32))

        @pl.when(i == grid_n - 1)
        def _():
            # Partial last block: rows >= last_valid_rows hold Pallas padding
            # garbage.  Force them to the safe pair (0, 1) so each element
            # contributes exactly (const_term + kappa); the wrapper subtracts
            # that analytically.
            yp = yp_ref[...].astype(jnp.float32)
            yt = yt_ref[...].astype(jnp.float32)
            row = jax.lax.broadcasted_iota(jnp.int32, (tm, lane), 0)
            valid = row < last_valid_rows
            yp = jnp.where(valid, yp, 0.0)
            yt = jnp.where(valid, yt, 1.0)
            out_ref[...] = partial_sum(yp, yt)


def gamma_loss(y_pred, y_true, kappa, *, tile_rows=4096):
    """Pallas implementation of GammaLoss.forward (returns scalar mean loss)."""
    assert y_pred.shape == y_true.shape
    total = y_pred.size
    assert total > 0
    lane = _LANE

    yp_flat = y_pred.reshape(-1)
    yt_flat = y_true.reshape(-1)

    # Lane alignment only: pad < 128 elements, and only when total % 128 != 0.
    m = pl.cdiv(total, lane)
    lane_pad = m * lane - total
    if lane_pad:
        yp_flat = jnp.pad(yp_flat, (0, lane_pad), constant_values=0.0)
        yt_flat = jnp.pad(yt_flat, (0, lane_pad), constant_values=1.0)
    yp2 = yp_flat.reshape(m, lane)
    yt2 = yt_flat.reshape(m, lane)

    # Tile rows: as large as allowed, but split into >= 2 blocks when possible
    # so v7x's two TensorCores both get work on mid-sized inputs.
    tile_rows = max(_SUBLANE, _round_up(int(tile_rows), _SUBLANE))
    if m <= _SUBLANE:
        tm = m                      # single block equal to the full row dim
    else:
        tm = min(tile_rows, _round_up(pl.cdiv(m, 2), _SUBLANE))
    grid_n = pl.cdiv(m, tm)
    last_valid_rows = m - (grid_n - 1) * tm     # real rows in the last block

    kappa_f = float(kappa)
    const_term = float(math.lgamma(kappa_f) - kappa_f * math.log(kappa_f))

    kernel = functools.partial(
        _gamma_loss_kernel,
        kappa=kappa_f,
        const_term=const_term,
        tm=tm,
        lane=lane,
        grid_n=grid_n,
        last_valid_rows=last_valid_rows,
    )

    partials = pl.pallas_call(
        kernel,
        out_shape=jax.ShapeDtypeStruct((grid_n, 1, lane), jnp.float32),
        grid_spec=pltpu.PrefetchScalarGridSpec(
            num_scalar_prefetch=0,
            grid=(grid_n,),
            in_specs=[
                pl.BlockSpec((tm, lane), lambda i: (i, 0)),
                pl.BlockSpec((tm, lane), lambda i: (i, 0)),
            ],
            out_specs=pl.BlockSpec((1, 1, lane), lambda i: (i, 0, 0)),
        ),
        compiler_params=pltpu.CompilerParams(
            dimension_semantics=("parallel",),
        ),
    )(yp2, yt2)

    # Every padded / masked element contributes exactly (const_term + kappa);
    # subtract analytically and divide by the true element count.
    fake = grid_n * tm * lane - total
    loss_sum = jnp.sum(partials) - jnp.float32(fake * (const_term + kappa_f))
    return loss_sum / jnp.float32(total)


def gamma_loss_ref(y_pred, y_true, kappa):
    """Pure-JAX reference mirroring the PyTorch forward."""
    k = jnp.float32(kappa)
    yp = y_pred.astype(jnp.float32)
    yt = y_true.astype(jnp.float32)
    elem = (jax.scipy.special.gammaln(k)
            + k * yp
            - k * jnp.log(k)
            - (k - 1.0) * jnp.log(yt)
            + k * yt * jnp.exp(-yp))
    return jnp.mean(elem)


if __name__ == "__main__":
    kappa = 2.5
    key = jax.random.PRNGKey(0)

    # Test 1: lane-aligned shape (2048 elems) -> zero pad, mask-free path.
    k1, k2 = jax.random.split(key)
    shape = (2, 4, 16, 16)  # batch=2, channels=4, spatial=16x16 -> 2048 elems
    y_pred = jax.random.normal(k1, shape, dtype=jnp.float32) * 0.5
    y_true = jax.random.uniform(k2, shape, dtype=jnp.float32,
                                minval=0.1, maxval=3.0)
    loss = jax.block_until_ready(gamma_loss(y_pred, y_true, kappa))
    ref = gamma_loss_ref(y_pred, y_true, kappa)
    assert jnp.allclose(loss, ref, rtol=1e-4, atol=1e-4), (loss, ref)

    # Test 2: ragged shape (105 elems) -> tiny lane pad + analytic correction.
    k3, k4 = jax.random.split(k2)
    shape2 = (3, 5, 7)
    y_pred2 = jax.random.normal(k3, shape2, dtype=jnp.float32) * 0.5
    y_true2 = jax.random.uniform(k4, shape2, dtype=jnp.float32,
                                 minval=0.1, maxval=3.0)
    loss2 = jax.block_until_ready(gamma_loss(y_pred2, y_true2, kappa))
    ref2 = gamma_loss_ref(y_pred2, y_true2, kappa)
    assert jnp.allclose(loss2, ref2, rtol=1e-4, atol=1e-4), (loss2, ref2)

    # Test 3: 4200 elems -> 2-block grid with a partial last block (exercises
    # the pl.when-gated last-block mask path) + analytic correction.
    k5, k6 = jax.random.split(k4)
    shape3 = (4, 3, 50, 7)
    y_pred3 = jax.random.normal(k5, shape3, dtype=jnp.float32) * 0.5
    y_true3 = jax.random.uniform(k6, shape3, dtype=jnp.float32,
                                 minval=0.1, maxval=3.0)
    loss3 = jax.block_until_ready(gamma_loss(y_pred3, y_true3, kappa))
    ref3 = gamma_loss_ref(y_pred3, y_true3, kappa)
    assert jnp.allclose(loss3, ref3, rtol=1e-4, atol=1e-4), (loss3, ref3)

    print("KERNEL_OK")
</pallas_src>

<mosaic_0001>
module attributes {stable_mosaic.version = 11 : i64} {
  func.func @_gamma_loss_kernel(%arg0: i32, %arg1: memref<16x128xf32, #tpu.memory_space<vmem>>, %arg2: memref<16x128xf32, #tpu.memory_space<vmem>>, %arg3: memref<1x1x128xf32, #tpu.memory_space<vmem>>) attributes {dimension_semantics = [#tpu.dimension_semantics<parallel>], iteration_bounds = array<i64: 1>, scalar_prefetch = 0 : i64, scratch_operands = 0 : i64, tpu.core_type = #tpu.core_type<tc>, window_params = [{transform_indices = @transform_0, window_bounds = array<i64: 16, 128>}, {transform_indices = @transform_1, window_bounds = array<i64: 16, 128>}, {transform_indices = @transform_2, window_bounds = array<i64: 1, 1, 128>}]} {
    %c0 = arith.constant 0 : index
    %c0_0 = arith.constant 0 : index
    %0 = vector.load %arg1[%c0, %c0_0] : memref<16x128xf32, #tpu.memory_space<vmem>>, vector<16x128xf32>
    %c0_1 = arith.constant 0 : index
    %c0_2 = arith.constant 0 : index
    %1 = vector.load %arg2[%c0_1, %c0_2] : memref<16x128xf32, #tpu.memory_space<vmem>>, vector<16x128xf32>
    %cst = arith.constant 0.000000e+00 : f32
    %2 = vector.broadcast %cst : f32 to vector<16x128xf32>
    %3 = arith.subf %2, %0 : vector<16x128xf32>
    %4 = math.exp %3 : vector<16x128xf32>
    %5 = arith.mulf %1, %4 : vector<16x128xf32>
    %6 = arith.addf %0, %5 : vector<16x128xf32>
    %cst_3 = arith.constant 2.500000e+00 : f32
    %7 = vector.broadcast %cst_3 : f32 to vector<16x128xf32>
    %8 = arith.mulf %7, %6 : vector<16x128xf32>
    %cst_4 = arith.constant -2.00604391 : f32
    %9 = vector.broadcast %cst_4 : f32 to vector<16x128xf32>
    %10 = arith.addf %9, %8 : vector<16x128xf32>
    %11 = math.log %1 : vector<16x128xf32>
    %cst_5 = arith.constant 1.500000e+00 : f32
    %12 = vector.broadcast %cst_5 : f32 to vector<16x128xf32>
    %13 = arith.mulf %12, %11 : vector<16x128xf32>
    %14 = arith.subf %10, %13 : vector<16x128xf32>
    %cst_6 = arith.constant dense<0.000000e+00> : vector<128xf32>
    %15 = vector.multi_reduction <add>, %14, %cst_6 [0] : vector<16x128xf32> to vector<128xf32>
    %16 = vector.shape_cast %15 : vector<128xf32> to vector<1x128xf32>
    %17 = vector.shape_cast %16 : vector<1x128xf32> to vector<1x1x128xf32>
    %c0_7 = arith.constant 0 : index
    %c0_8 = arith.constant 0 : index
    %c0_9 = arith.constant 0 : index
    %18 = vector.load %arg3[%c0_7, %c0_8, %c0_9] : memref<1x1x128xf32, #tpu.memory_space<vmem>>, vector<1x1x128xf32>
    tpu.vector_store %arg3[%c0_7, %c0_8, %c0_9], %17 {strides = array<i32>} : memref<1x1x128xf32, #tpu.memory_space<vmem>>, vector<1x1x128xf32>,
    return
  }
  func.func @transform_0(%arg0: i32) -> (i32, i32) {
    %c0_i32 = arith.constant 0 : i32
    %c0_i32_0 = arith.constant 0 : i32
    return %arg0, %c0_i32 : i32, i32
  }
  func.func @transform_1(%arg0: i32) -> (i32, i32) {
    %c0_i32 = arith.constant 0 : i32
    %c0_i32_0 = arith.constant 0 : i32
    return %arg0, %c0_i32 : i32, i32
  }
  func.func @transform_2(%arg0: i32) -> (i32, i32, i32) {
    %c0_i32 = arith.constant 0 : i32
    %c0_i32_0 = arith.constant 0 : i32
    %c0_i32_1 = arith.constant 0 : i32
    return %arg0, %c0_i32, %c0_i32_0 : i32, i32, i32
  }
}

</mosaic_0001>

<llo_original>
// kernel: tpu_custom_call.1
$region0: #{tpu_custom_call.1}
  #allocation0 [shape = 'u32[]', space=smem, size = 0x4, offset = 0x4, fixed_abs, tag = 'smem constant byte address 0x4 - core index']
  #allocation1 [shape = 'u32[72,128]{1,0:T(1,128)}', space=vmem, size = 0x9000, scoped, tag = 'internal scratch']
  %s0 = inlined_call_operand.hbm [shape: f32[16,128], index: 0, kind: input, shape index: {}]
  %s1 = inlined_call_operand.hbm [shape: f32[16,128], index: 1, kind: input, shape index: {}]
  %s2 = inlined_call_operand.hbm [shape: f32[1,1,128], index: 2, kind: output, shape index: {}]
  %s3 = sld [smem:[#allocation0]]
  $region26: #{tpu_custom_call.1} parent=0
    _
  %s5 = ssub.s32 1, %s3
  %s6 = scalar_select 0, %s5, %s3
  $region1: #{tpu_custom_call.1} parent=0
    #allocation2 [shape = 'u8[8192]{0}', space=vmem, size = 0x2000, scoped, tag = 'input window, operand 0, single buffered']
    #allocation3 [shape = 's32[1]{0}', space=sflag, size = 0x4, scoped, tag = 'scoped memory for tpu_custom_call.1']
    #allocation4 [shape = 's32[1]{0}', space=sflag, size = 0x4, scoped, tag = 'scoped memory for tpu_custom_call.1']
    #allocation5 [shape = 'u8[8192]{0}', space=vmem, size = 0x2000, scoped, tag = 'input window, operand 1, single buffered']
    #allocation6 [shape = 's32[1]{0}', space=sflag, size = 0x4, scoped, tag = 'scoped memory for tpu_custom_call.1']
    #allocation7 [shape = 'u8[512]{0}', space=vmem, size = 0x400, scoped, tag = 'output window, operand 0, single buffered']
    %7 = vsyncpa [#allocation3], 0
    %8 = vsyncpa [#allocation6], 0
    %9 = vsyncpa [#allocation4], 0
    // Predicated region
    $region2: #{tpu_custom_call.1} parent=1 // pred_check
      _
    $region3: #{tpu_custom_call.1} parent=1 // pred_check_branch
      %11 = sbr.rel (0) target = $region5
    $region4: #{tpu_custom_call.1} parent=1 // pred_region
      %13 = vsyncadd [#allocation3], 0
      %s14 = sshll.u32 %s0, 4
      %s15 = int_to_ptr.hbm [resolvable:$true] %s14
      %s16 = sshll.u32 [#allocation2], 4
      %s17 = int_to_ptr.vmem [resolvable:$true] %s16
      %22 = dma.hbm_to_vmem [thread:$0]  %s15, 256, %s17, [#allocation3], 128, 128, 8
    $region5: #{tpu_custom_call.1} parent=1 // pred_fallthru
      _
    // Predicated region
    $region6: #{tpu_custom_call.1} parent=1 // pred_check
      _
    $region7: #{tpu_custom_call.1} parent=1 // pred_check_branch
      %24 = sbr.rel (0) target = $region9
    $region8: #{tpu_custom_call.1} parent=1 // pred_region
      %26 = vsyncadd [#allocation6], 0
      %s27 = sshll.u32 %s1, 4
      %s28 = int_to_ptr.hbm [resolvable:$true] %s27
      %s29 = sshll.u32 [#allocation5], 4
      %s30 = int_to_ptr.vmem [resolvable:$true] %s29
      %35 = dma.hbm_to_vmem [thread:$0]  %s28, 256, %s30, [#allocation6], 128, 128, 8
    $region9: #{tpu_custom_call.1} parent=1 // pred_fallthru
      _
    // Predicated region
    $region10: #{tpu_custom_call.1} parent=1 // pred_check
      _
    $region11: #{tpu_custom_call.1} parent=1 // pred_check_branch
      %37 = sbr.rel (0) target = $region13
    $region12: #{tpu_custom_call.1} parent=1 // pred_region
      %39 = dma.done [#allocation3], 256
    $region13: #{tpu_custom_call.1} parent=1 // pred_fallthru
      _
    // Predicated region
    $region14: #{tpu_custom_call.1} parent=1 // pred_check
      _
    $region15: #{tpu_custom_call.1} parent=1 // pred_check_branch
      %41 = sbr.rel (0) target = $region17
    $region16: #{tpu_custom_call.1} parent=1 // pred_region
      %43 = dma.done [#allocation6], 256
    $region17: #{tpu_custom_call.1} parent=1 // pred_fallthru
      _
    %v44 = vld [vmem:[#allocation2] sm:$0xff]
    %v45 = vld [vmem:[#allocation2 + $0x8] sm:$0xff]
    %v46 = vld [vmem:[#allocation5] sm:$0xff]
    %v47 = vld [vmem:[#allocation5 + $0x8] sm:$0xff]
    %v48 = vsub.f32 0.0, %v44
    %v49 = vsub.f32 0.0, %v45
    %v50 = vmul.f32 %v48, 1.442695
    %v51 = vpow.pop %v50
    %v52 = vmul.f32 %v49, 1.442695
    %v53 = vpow.pop %v52
    %v54 = vmul.f32 %v46, %v51
    %v55 = vmul.f32 %v47, %v53
    %v56 = vadd.f32 %v44, %v54
    %v57 = vadd.f32 %v45, %v55
    %v58 = vmul.f32 %v56, 2.5
    %v59 = vmul.f32 %v57, 2.5
    %v60 = vadd.f32 %v58, -2.006044
    %v61 = vadd.f32 %v59, -2.006044
    %v62 = vlog2.pop %v46
    %v63 = vmul.f32 %v62, 0.6931472
    %v64 = vlog2.pop %v47
    %v65 = vmul.f32 %v64, 0.6931472
    %v66 = vmul.f32 %v63, 1.5
    %v67 = vmul.f32 %v65, 1.5
    %v68 = vsub.f32 %v60, %v66
    %v69 = vsub.f32 %v61, %v67
    %v70 = vadd.f32 %v68, %v69
    %v71 = vrot.slane %v70, 4
    %v72 = vadd.f32 %v70, %v71
    %v73 = vrot.slane %v72, 2
    %v74 = vadd.f32 %v72, %v73
    %v75 = vrot.slane %v74, 1
    %v76 = vadd.f32 %v74, %v75
    %77 = vst [vmem:[#allocation7] sm:$0x1] %v76
    // Predicated region
    $region18: #{tpu_custom_call.1} parent=1 // pred_check
      _
    $region19: #{tpu_custom_call.1} parent=1 // pred_check_branch
      %79 = sbr.rel (0) target = $region21
    $region20: #{tpu_custom_call.1} parent=1 // pred_region
      %81 = vsyncadd [#allocation4], 0
      %s83 = sshll.u32 [#allocation7], 4
      %s84 = int_to_ptr.vmem [resolvable:$true] %s83
      %s85 = sshll.u32 %s2, 4
      %s86 = int_to_ptr.hbm [resolvable:$true] %s85
      %88 = dma.vmem_to_hbm [thread:$0]  %s84, 16, %s86, [#allocation4]
    $region21: #{tpu_custom_call.1} parent=1 // pred_fallthru
      _
    // Predicated region
    $region22: #{tpu_custom_call.1} parent=1 // pred_check
      _
    $region23: #{tpu_custom_call.1} parent=1 // pred_check_branch
      %90 = sbr.rel (0) target = $region25
    $region24: #{tpu_custom_call.1} parent=1 // pred_region
      %92 = dma.done [#allocation4], 16
    $region25: #{tpu_custom_call.1} parent=1 // pred_fallthru
      _
    %93 = vsyncpa [#allocation3], 1
    %94 = vsyncpa [#allocation6], 1
    %95 = vsyncpa [#allocation4], 1

</llo_original>
